<compile_context>
chip_gen: v7x
topology: tpu7x:2x2x1
jax: 0.10.0
libtpu: 0.0.40
codegen_flags: <defaults>
</compile_context>

<pallas_src>
import functools

import jax
import jax.numpy as jnp
from jax.experimental import pallas as pl
from jax.experimental.pallas import tpu as pltpu

_LANE = 128                      # vreg lane width
_SUBLANE = 8                     # vreg sublane depth (f32)
_MIN_COLS = _LANE * _SUBLANE     # 1024: batch-tile granule (full (8,128) vregs)


def _neuron_kernel(w_ref, b_ref, x_ref, o_ref, *, n_dims, n_targets, r_chunk):
    """out[t] = sigmoid(sum_d w[t,d] * x[d] + b[t]) on dense (R,128) slabs.

    w_ref: (n_targets * n_dims,) f32 SMEM, row-major (t, d)
    b_ref: (n_targets,)          f32 SMEM
    x_ref: (n_dims,    R, 128)   f32 VMEM   (R = batch-tile / 128, multiple of 8)
    o_ref: (n_targets, R, 128)   f32 VMEM
    """
    r_total = x_ref.shape[1]
    n_chunks = r_total // r_chunk

    # Hoist scalar weight/bias reads and the bias broadcasts out of the loop
    # (broadcast_in_dim is not CSE'd by JAX).
    w = [[w_ref[t * n_dims + d] for d in range(n_dims)] for t in range(n_targets)]
    bias_slab = [jnp.full((r_chunk, _LANE), b_ref[t], dtype=jnp.float32)
                 for t in range(n_targets)]

    def body(j, carry):
        row = pl.multiple_of(j * r_chunk, r_chunk)
        sl = pl.ds(row, r_chunk)
        # Load the D feature slabs once per chunk, reuse for every target.
        xs = [x_ref[d, sl, :] for d in range(n_dims)]
        for t in range(n_targets):                         # static unroll (T = 3)
            acc = bias_slab[t]
            for d in range(n_dims):                        # static unroll (D = 5)
                acc = acc + w[t][d] * xs[d]                # VPU FMA, no MXU (K=5)
            o_ref[t, sl, :] = jax.nn.sigmoid(acc).astype(o_ref.dtype)   # EUP
        return carry

    jax.lax.fori_loop(0, n_chunks, body, 0)


def _choose_tiling(batch, block_batch):
    """(bn, b_pad, n_tiles): bn is a multiple of 1024; force >=2 tiles whenever
    the padded batch allows so the parallel grid axis spans both v7x cores."""
    b_pad = pl.cdiv(batch, _MIN_COLS) * _MIN_COLS
    bn = max(_MIN_COLS, (min(block_batch, b_pad) // _MIN_COLS) * _MIN_COLS)
    if b_pad // bn < 2 and b_pad >= 2 * _MIN_COLS:
        bn = (b_pad // (2 * _MIN_COLS)) * _MIN_COLS
    b_pad = pl.cdiv(b_pad, bn) * bn
    return bn, b_pad, b_pad // bn


def _forward_t(x_t, weight, bias, block_batch):
    """Feature-major core: sigmoid(W @ x_t + b), (D, B) -> (T, B)."""
    D, B = x_t.shape
    T, D2 = weight.shape
    assert D == D2 and bias.shape == (T,)

    bn, b_pad, n_tiles = _choose_tiling(B, block_batch)
    r = bn // _LANE                               # sublane rows per tile (mult of 8)
    r_chunk = 32 if r % 32 == 0 else (16 if r % 16 == 0 else 8)

    if b_pad != B:
        # Zero-pad the tail; padded output columns (= sigmoid(bias)) are sliced
        # off below and never observed.
        x_t = jnp.pad(x_t, ((0, 0), (0, b_pad - B)))
    # Free row-major reshape: batch spread over (sublanes, lanes).
    x3 = x_t.reshape(D, b_pad // _LANE, _LANE)

    # Exact double-buffer footprint (one in + one out tile, x2) + headroom;
    # well below v7x's 64 MiB physical / 32 MiB scoped VMEM.
    tile_bytes = (D + T) * r * _LANE * 4
    vmem_limit = int(min(32 << 20, max(8 << 20, 3 * tile_bytes)))

    out3 = pl.pallas_call(
        functools.partial(_neuron_kernel, n_dims=D, n_targets=T, r_chunk=r_chunk),
        out_shape=jax.ShapeDtypeStruct((T, b_pad // _LANE, _LANE), x_t.dtype),
        grid=(n_tiles,),
        in_specs=[
            pl.BlockSpec(memory_space=pltpu.MemorySpace.SMEM),   # weight (resident)
            pl.BlockSpec(memory_space=pltpu.MemorySpace.SMEM),   # bias   (resident)
            pl.BlockSpec((D, r, _LANE), lambda i: (0, i, 0)),    # x batch tile
        ],
        out_specs=pl.BlockSpec((T, r, _LANE), lambda i: (0, i, 0)),
        compiler_params=pltpu.CompilerParams(
            dimension_semantics=("parallel",),    # shard batch tiles across TCs
            vmem_limit_bytes=vmem_limit,
        ),
    )(weight.reshape(-1).astype(jnp.float32), bias.astype(jnp.float32), x3)

    return out3.reshape(T, b_pad)[:, :B]


@functools.partial(jax.jit, static_argnames=("block_batch",))
def neuron_forward_t(x_t, weight, bias, *, block_batch=65536):
    """Feature-major fast path (no wrapper transposes): (n_dims, B) -> (n_targets, B)."""
    return _forward_t(x_t, weight, bias, block_batch)


@functools.partial(jax.jit, static_argnames=("block_batch",))
def neuron_forward(x, weight, bias, *, block_batch=65536):
    """Module-matching layout: sigmoid(x @ weight.T + bias), (B, n_dims) -> (B, n_targets).

    One fused pad-of-transpose on the way in, one transpose on the way out;
    callers that can use the feature-major layout should call neuron_forward_t.
    """
    return _forward_t(x.T, weight, bias, block_batch).T


if __name__ == "__main__":
    n_dims, n_targets = 5, 3

    key = jax.random.PRNGKey(0)
    kx, kw, kb, kx2 = jax.random.split(key, 4)

    # Deterministic parameter init mimicking torch.nn.Linear's uniform range.
    bound = 1.0 / jnp.sqrt(jnp.float32(n_dims))
    weight = jax.random.uniform(kw, (n_targets, n_dims), jnp.float32, -bound, bound)
    bias = jax.random.uniform(kb, (n_targets,), jnp.float32, -bound, bound)

    # Small case (matches the PyTorch example shapes: batch=8, n_dims=5).
    x = jax.random.normal(kx, (8, n_dims), jnp.float32)
    out = jax.block_until_ready(neuron_forward(x, weight, bias))
    ref = jax.nn.sigmoid(x @ weight.T + bias)
    assert out.shape == (8, n_targets)
    assert jnp.allclose(out, ref, atol=1e-5, rtol=1e-5)

    # Multi-tile case: exercises >1 grid step (v7x dual-core sharding path),
    # the in-kernel chunk loop and edge padding (2500 rows -> 3 x 1024 tiles).
    x_big = jax.random.normal(kx2, (2500, n_dims), jnp.float32)
    out_big = jax.block_until_ready(
        neuron_forward(x_big, weight, bias, block_batch=1024))
    ref_big = jax.nn.sigmoid(x_big @ weight.T + bias)
    assert out_big.shape == (2500, n_targets)
    assert jnp.allclose(out_big, ref_big, atol=1e-5, rtol=1e-5)

    # Feature-major fast path: zero wrapper transposes.
    out_t = jax.block_until_ready(neuron_forward_t(x_big.T, weight, bias))
    assert out_t.shape == (n_targets, 2500)
    assert jnp.allclose(out_t.T, ref_big, atol=1e-5, rtol=1e-5)

    print("KERNEL_OK")
</pallas_src>

<mosaic_0001>
module attributes {stable_mosaic.version = 11 : i64} {
  func.func @_neuron_kernel(%arg0: i32, %arg1: memref<15xf32, #tpu.memory_space<smem>>, %arg2: memref<3xf32, #tpu.memory_space<smem>>, %arg3: memref<5x8x128xf32, #tpu.memory_space<vmem>>, %arg4: memref<3x8x128xf32, #tpu.memory_space<vmem>>) attributes {dimension_semantics = [#tpu.dimension_semantics<parallel>], iteration_bounds = array<i64: 1>, scalar_prefetch = 0 : i64, scratch_operands = 0 : i64, tpu.core_type = #tpu.core_type<tc>, window_params = [{transform_indices = @transform_0, window_bounds = array<i64: 15>}, {transform_indices = @transform_1, window_bounds = array<i64: 3>}, {transform_indices = @transform_2, window_bounds = array<i64: 5, 8, 128>}, {transform_indices = @transform_3, window_bounds = array<i64: 3, 8, 128>}]} {
    %c0 = arith.constant 0 : index
    %0 = memref.load %arg1[%c0] : memref<15xf32, #tpu.memory_space<smem>>
    %c1 = arith.constant 1 : index
    %1 = memref.load %arg1[%c1] : memref<15xf32, #tpu.memory_space<smem>>
    %c2 = arith.constant 2 : index
    %2 = memref.load %arg1[%c2] : memref<15xf32, #tpu.memory_space<smem>>
    %c3 = arith.constant 3 : index
    %3 = memref.load %arg1[%c3] : memref<15xf32, #tpu.memory_space<smem>>
    %c4 = arith.constant 4 : index
    %4 = memref.load %arg1[%c4] : memref<15xf32, #tpu.memory_space<smem>>
    %c5 = arith.constant 5 : index
    %5 = memref.load %arg1[%c5] : memref<15xf32, #tpu.memory_space<smem>>
    %c6 = arith.constant 6 : index
    %6 = memref.load %arg1[%c6] : memref<15xf32, #tpu.memory_space<smem>>
    %c7 = arith.constant 7 : index
    %7 = memref.load %arg1[%c7] : memref<15xf32, #tpu.memory_space<smem>>
    %c8 = arith.constant 8 : index
    %8 = memref.load %arg1[%c8] : memref<15xf32, #tpu.memory_space<smem>>
    %c9 = arith.constant 9 : index
    %9 = memref.load %arg1[%c9] : memref<15xf32, #tpu.memory_space<smem>>
    %c10 = arith.constant 10 : index
    %10 = memref.load %arg1[%c10] : memref<15xf32, #tpu.memory_space<smem>>
    %c11 = arith.constant 11 : index
    %11 = memref.load %arg1[%c11] : memref<15xf32, #tpu.memory_space<smem>>
    %c12 = arith.constant 12 : index
    %12 = memref.load %arg1[%c12] : memref<15xf32, #tpu.memory_space<smem>>
    %c13 = arith.constant 13 : index
    %13 = memref.load %arg1[%c13] : memref<15xf32, #tpu.memory_space<smem>>
    %c14 = arith.constant 14 : index
    %14 = memref.load %arg1[%c14] : memref<15xf32, #tpu.memory_space<smem>>
    %c0_0 = arith.constant 0 : index
    %15 = memref.load %arg2[%c0_0] : memref<3xf32, #tpu.memory_space<smem>>
    %16 = vector.broadcast %15 : f32 to vector<8x128xf32>
    %c1_1 = arith.constant 1 : index
    %17 = memref.load %arg2[%c1_1] : memref<3xf32, #tpu.memory_space<smem>>
    %18 = vector.broadcast %17 : f32 to vector<8x128xf32>
    %c2_2 = arith.constant 2 : index
    %19 = memref.load %arg2[%c2_2] : memref<3xf32, #tpu.memory_space<smem>>
    %20 = vector.broadcast %19 : f32 to vector<8x128xf32>
    %c0_i32 = arith.constant 0 : i32
    %c8_i32 = arith.constant 8 : i32
    %21 = arith.muli %c0_i32, %c8_i32 : i32
    %22 = tpu.assume_multiple %21, 8 : i32
    %c0_3 = arith.constant 0 : index
    %23 = arith.index_cast %22 : i32 to index
    %c0_4 = arith.constant 0 : index
    %24 = vector.load %arg3[%c0_3, %23, %c0_4] : memref<5x8x128xf32, #tpu.memory_space<vmem>>, vector<1x8x128xf32>
    %25 = vector.shape_cast %24 : vector<1x8x128xf32> to vector<8x128xf32>
    %c1_5 = arith.constant 1 : index
    %26 = arith.index_cast %22 : i32 to index
    %c0_6 = arith.constant 0 : index
    %27 = vector.load %arg3[%c1_5, %26, %c0_6] : memref<5x8x128xf32, #tpu.memory_space<vmem>>, vector<1x8x128xf32>
    %28 = vector.shape_cast %27 : vector<1x8x128xf32> to vector<8x128xf32>
    %c2_7 = arith.constant 2 : index
    %29 = arith.index_cast %22 : i32 to index
    %c0_8 = arith.constant 0 : index
    %30 = vector.load %arg3[%c2_7, %29, %c0_8] : memref<5x8x128xf32, #tpu.memory_space<vmem>>, vector<1x8x128xf32>
    %31 = vector.shape_cast %30 : vector<1x8x128xf32> to vector<8x128xf32>
    %c3_9 = arith.constant 3 : index
    %32 = arith.index_cast %22 : i32 to index
    %c0_10 = arith.constant 0 : index
    %33 = vector.load %arg3[%c3_9, %32, %c0_10] : memref<5x8x128xf32, #tpu.memory_space<vmem>>, vector<1x8x128xf32>
    %34 = vector.shape_cast %33 : vector<1x8x128xf32> to vector<8x128xf32>
    %c4_11 = arith.constant 4 : index
    %35 = arith.index_cast %22 : i32 to index
    %c0_12 = arith.constant 0 : index
    %36 = vector.load %arg3[%c4_11, %35, %c0_12] : memref<5x8x128xf32, #tpu.memory_space<vmem>>, vector<1x8x128xf32>
    %37 = vector.shape_cast %36 : vector<1x8x128xf32> to vector<8x128xf32>
    %38 = vector.broadcast %0 : f32 to vector<8x128xf32>
    %39 = arith.mulf %38, %25 : vector<8x128xf32>
    %40 = arith.addf %16, %39 : vector<8x128xf32>
    %41 = vector.broadcast %1 : f32 to vector<8x128xf32>
    %42 = arith.mulf %41, %28 : vector<8x128xf32>
    %43 = arith.addf %40, %42 : vector<8x128xf32>
    %44 = vector.broadcast %2 : f32 to vector<8x128xf32>
    %45 = arith.mulf %44, %31 : vector<8x128xf32>
    %46 = arith.addf %43, %45 : vector<8x128xf32>
    %47 = vector.broadcast %3 : f32 to vector<8x128xf32>
    %48 = arith.mulf %47, %34 : vector<8x128xf32>
    %49 = arith.addf %46, %48 : vector<8x128xf32>
    %50 = vector.broadcast %4 : f32 to vector<8x128xf32>
    %51 = arith.mulf %50, %37 : vector<8x128xf32>
    %52 = arith.addf %49, %51 : vector<8x128xf32>
    %53 = arith.negf %52 : vector<8x128xf32>
    %54 = math.exp %53 : vector<8x128xf32>
    %cst = arith.constant 1.000000e+00 : f32
    %55 = vector.broadcast %cst : f32 to vector<8x128xf32>
    %56 = arith.addf %55, %54 : vector<8x128xf32>
    %57 = arith.divf %55, %56 : vector<8x128xf32>
    %c0_13 = arith.constant 0 : index
    %58 = arith.index_cast %22 : i32 to index
    %c0_14 = arith.constant 0 : index
    %59 = vector.load %arg4[%c0_13, %58, %c0_14] : memref<3x8x128xf32, #tpu.memory_space<vmem>>, vector<1x8x128xf32>
    %60 = vector.shape_cast %59 : vector<1x8x128xf32> to vector<8x128xf32>
    %61 = vector.shape_cast %57 : vector<8x128xf32> to vector<1x8x128xf32>
    tpu.vector_store %arg4[%c0_13, %58, %c0_14], %61 {strides = array<i32>} : memref<3x8x128xf32, #tpu.memory_space<vmem>>, vector<1x8x128xf32>,
    %62 = vector.broadcast %5 : f32 to vector<8x128xf32>
    %63 = arith.mulf %62, %25 : vector<8x128xf32>
    %64 = arith.addf %18, %63 : vector<8x128xf32>
    %65 = vector.broadcast %6 : f32 to vector<8x128xf32>
    %66 = arith.mulf %65, %28 : vector<8x128xf32>
    %67 = arith.addf %64, %66 : vector<8x128xf32>
    %68 = vector.broadcast %7 : f32 to vector<8x128xf32>
    %69 = arith.mulf %68, %31 : vector<8x128xf32>
    %70 = arith.addf %67, %69 : vector<8x128xf32>
    %71 = vector.broadcast %8 : f32 to vector<8x128xf32>
    %72 = arith.mulf %71, %34 : vector<8x128xf32>
    %73 = arith.addf %70, %72 : vector<8x128xf32>
    %74 = vector.broadcast %9 : f32 to vector<8x128xf32>
    %75 = arith.mulf %74, %37 : vector<8x128xf32>
    %76 = arith.addf %73, %75 : vector<8x128xf32>
    %77 = arith.negf %76 : vector<8x128xf32>
    %78 = math.exp %77 : vector<8x128xf32>
    %cst_15 = arith.constant 1.000000e+00 : f32
    %79 = vector.broadcast %cst_15 : f32 to vector<8x128xf32>
    %80 = arith.addf %79, %78 : vector<8x128xf32>
    %81 = arith.divf %79, %80 : vector<8x128xf32>
    %c1_16 = arith.constant 1 : index
    %82 = arith.index_cast %22 : i32 to index
    %c0_17 = arith.constant 0 : index
    %83 = vector.load %arg4[%c1_16, %82, %c0_17] : memref<3x8x128xf32, #tpu.memory_space<vmem>>, vector<1x8x128xf32>
    %84 = vector.shape_cast %83 : vector<1x8x128xf32> to vector<8x128xf32>
    %85 = vector.shape_cast %81 : vector<8x128xf32> to vector<1x8x128xf32>
    tpu.vector_store %arg4[%c1_16, %82, %c0_17], %85 {strides = array<i32>} : memref<3x8x128xf32, #tpu.memory_space<vmem>>, vector<1x8x128xf32>,
    %86 = vector.broadcast %10 : f32 to vector<8x128xf32>
    %87 = arith.mulf %86, %25 : vector<8x128xf32>
    %88 = arith.addf %20, %87 : vector<8x128xf32>
    %89 = vector.broadcast %11 : f32 to vector<8x128xf32>
    %90 = arith.mulf %89, %28 : vector<8x128xf32>
    %91 = arith.addf %88, %90 : vector<8x128xf32>
    %92 = vector.broadcast %12 : f32 to vector<8x128xf32>
    %93 = arith.mulf %92, %31 : vector<8x128xf32>
    %94 = arith.addf %91, %93 : vector<8x128xf32>
    %95 = vector.broadcast %13 : f32 to vector<8x128xf32>
    %96 = arith.mulf %95, %34 : vector<8x128xf32>
    %97 = arith.addf %94, %96 : vector<8x128xf32>
    %98 = vector.broadcast %14 : f32 to vector<8x128xf32>
    %99 = arith.mulf %98, %37 : vector<8x128xf32>
    %100 = arith.addf %97, %99 : vector<8x128xf32>
    %101 = arith.negf %100 : vector<8x128xf32>
    %102 = math.exp %101 : vector<8x128xf32>
    %cst_18 = arith.constant 1.000000e+00 : f32
    %103 = vector.broadcast %cst_18 : f32 to vector<8x128xf32>
    %104 = arith.addf %103, %102 : vector<8x128xf32>
    %105 = arith.divf %103, %104 : vector<8x128xf32>
    %c2_19 = arith.constant 2 : index
    %106 = arith.index_cast %22 : i32 to index
    %c0_20 = arith.constant 0 : index
    %107 = vector.load %arg4[%c2_19, %106, %c0_20] : memref<3x8x128xf32, #tpu.memory_space<vmem>>, vector<1x8x128xf32>
    %108 = vector.shape_cast %107 : vector<1x8x128xf32> to vector<8x128xf32>
    %109 = vector.shape_cast %105 : vector<8x128xf32> to vector<1x8x128xf32>
    tpu.vector_store %arg4[%c2_19, %106, %c0_20], %109 {strides = array<i32>} : memref<3x8x128xf32, #tpu.memory_space<vmem>>, vector<1x8x128xf32>,
    %c1_i32 = arith.constant 1 : i32
    return
  }
  func.func @transform_0(%arg0: i32) -> i32 {
    %c0_i32 = arith.constant 0 : i32
    %c0_i32_0 = arith.constant 0 : i32
    return %c0_i32 : i32
  }
  func.func @transform_1(%arg0: i32) -> i32 {
    %c0_i32 = arith.constant 0 : i32
    %c0_i32_0 = arith.constant 0 : i32
    return %c0_i32 : i32
  }
  func.func @transform_2(%arg0: i32) -> (i32, i32, i32) {
    %c0_i32 = arith.constant 0 : i32
    %c0_i32_0 = arith.constant 0 : i32
    %c0_i32_1 = arith.constant 0 : i32
    return %c0_i32, %arg0, %c0_i32_0 : i32, i32, i32
  }
  func.func @transform_3(%arg0: i32) -> (i32, i32, i32) {
    %c0_i32 = arith.constant 0 : i32
    %c0_i32_0 = arith.constant 0 : i32
    %c0_i32_1 = arith.constant 0 : i32
    return %c0_i32, %arg0, %c0_i32_0 : i32, i32, i32
  }
}

</mosaic_0001>

<llo_original>
// kernel: neuron_forward.1
$region0: #{neuron_forward.1}
  #allocation0 [shape = 'u32[]', space=smem, size = 0x4, offset = 0x4, fixed_abs, tag = 'smem constant byte address 0x4 - core index']
  #allocation1 [shape = 'u32[144,128]{1,0:T(1,128)}', space=vmem, size = 0x12000, scoped, tag = 'internal scratch']
  %s0 = inlined_call_operand.vmem [shape: f32[15], index: 0, kind: input, shape index: {}]
  %s1 = inlined_call_operand.vmem [shape: f32[3], index: 1, kind: input, shape index: {}]
  %s2 = inlined_call_operand.vmem [shape: f32[5,8,128], index: 2, kind: input, shape index: {}]
  %s3 = inlined_call_operand.vmem [shape: f32[3,8,128], index: 3, kind: output, shape index: {}]
  %s4 = sld [smem:[#allocation0]]
  $region30: #{neuron_forward.1} parent=0
    _
  %s6 = ssub.s32 1, %s4
  %s7 = scalar_select 0, %s6, %s4
  $region1: #{neuron_forward.1} parent=0
    #allocation2 [shape = 'u8[512]{0}', space=smem, size = 0x200, scoped, tag = 'input window, operand 0, single buffered']
    #allocation3 [shape = 's32[1]{0}', space=sflag, size = 0x4, scoped, tag = 'scoped memory for neuron_forward.1']
    #allocation4 [shape = 'u8[512]{0}', space=smem, size = 0x200, scoped, tag = 'input window, operand 1, single buffered']
    #allocation5 [shape = 's32[1]{0}', space=sflag, size = 0x4, scoped, tag = 'scoped memory for neuron_forward.1']
    %8 = vsyncpa [#allocation3], 0
    %9 = vsyncpa [#allocation5], 0
    // Predicated region
    $region2: #{neuron_forward.1} parent=1 // pred_check
      _
    $region3: #{neuron_forward.1} parent=1 // pred_check_branch
      %11 = sbr.rel (0) target = $region5
    $region4: #{neuron_forward.1} parent=1 // pred_region
      %s13 = ssub.s32 16, 16
      %14 = vsyncadd [#allocation3], %s13
      %s16 = sshll.u32 %s0, 4
      %s17 = int_to_ptr.vmem [resolvable:$true] %s16
      %19 = dma.vmem_to_smem %s17, 16, [#allocation2], [#allocation3]
    $region5: #{neuron_forward.1} parent=1 // pred_fallthru
      _
    // Predicated region
    $region6: #{neuron_forward.1} parent=1 // pred_check
      _
    $region7: #{neuron_forward.1} parent=1 // pred_check_branch
      %21 = sbr.rel (0) target = $region9
    $region8: #{neuron_forward.1} parent=1 // pred_region
      %s23 = ssub.s32 16, 16
      %24 = vsyncadd [#allocation5], %s23
      %s26 = sshll.u32 %s1, 4
      %s27 = int_to_ptr.vmem [resolvable:$true] %s26
      %29 = dma.vmem_to_smem %s27, 16, [#allocation4], [#allocation5]
    $region9: #{neuron_forward.1} parent=1 // pred_fallthru
      _
    // Predicated region
    $region10: #{neuron_forward.1} parent=1 // pred_check
      _
    $region11: #{neuron_forward.1} parent=1 // pred_check_branch
      %31 = sbr.rel (0) target = $region13
    $region12: #{neuron_forward.1} parent=1 // pred_region
      _
    $region13: #{neuron_forward.1} parent=1 // pred_fallthru
      _
    // Predicated region
    $region14: #{neuron_forward.1} parent=1 // pred_check
      _
    $region15: #{neuron_forward.1} parent=1 // pred_check_branch
      %33 = sbr.rel (0) target = $region17
    $region16: #{neuron_forward.1} parent=1 // pred_region
      %34 = dma.done [#allocation3], 16
    $region17: #{neuron_forward.1} parent=1 // pred_fallthru
      _
    // Predicated region
    $region18: #{neuron_forward.1} parent=1 // pred_check
      _
    $region19: #{neuron_forward.1} parent=1 // pred_check_branch
      %36 = sbr.rel (0) target = $region21
    $region20: #{neuron_forward.1} parent=1 // pred_region
      %37 = dma.done [#allocation5], 16
    $region21: #{neuron_forward.1} parent=1 // pred_fallthru
      _
    %38 = sfence
    %s39 = sld [smem:[#allocation2]]
    %s40 = sld [smem:[#allocation2 + $0x1]]
    %s41 = sld [smem:[#allocation2 + $0x2]]
    %s42 = sld [smem:[#allocation2 + $0x3]]
    %s43 = sld [smem:[#allocation2 + $0x4]]
    %s44 = sld [smem:[#allocation2 + $0x5]]
    %s45 = sld [smem:[#allocation2 + $0x6]]
    %s46 = sld [smem:[#allocation2 + $0x7]]
    %s47 = sld [smem:[#allocation2 + $0x8]]
    %s48 = sld [smem:[#allocation2 + $0x9]]
    %s49 = sld [smem:[#allocation2 + $0xa]]
    %s50 = sld [smem:[#allocation2 + $0xb]]
    %s51 = sld [smem:[#allocation2 + $0xc]]
    %s52 = sld [smem:[#allocation2 + $0xd]]
    %s53 = sld [smem:[#allocation2 + $0xe]]
    %s54 = sld [smem:[#allocation4]]
    %v55 = vstv %s54
    %s56 = sld [smem:[#allocation4 + $0x1]]
    %v57 = vstv %s56
    %s58 = sld [smem:[#allocation4 + $0x2]]
    %v59 = vstv %s58
    %v60 = vld [vmem:[%s2] sm:$0xff]
    %s61 = sadd.s32 0, 8
    %s62 = scalar_lea.vmem %s2, %s61
    %v63 = vld [vmem:[%s62] sm:$0xff]
    %s64 = sadd.s32 0, 16
    %s65 = scalar_lea.vmem %s2, %s64
    %v66 = vld [vmem:[%s65] sm:$0xff]
    %s67 = sadd.s32 0, 24
    %s68 = scalar_lea.vmem %s2, %s67
    %v69 = vld [vmem:[%s68] sm:$0xff]
    %s70 = sadd.s32 0, 32
    %s71 = scalar_lea.vmem %s2, %s70
    %v72 = vld [vmem:[%s71] sm:$0xff]
    %v73 = vstv %s39
    %v74 = vmul.f32 %v73, %v60
    %v75 = vadd.f32 %v55, %v74
    %v76 = vstv %s40
    %v77 = vmul.f32 %v76, %v63
    %v78 = vadd.f32 %v75, %v77
    %v79 = vstv %s41
    %v80 = vmul.f32 %v79, %v66
    %v81 = vadd.f32 %v78, %v80
    %v82 = vstv %s42
    %v83 = vmul.f32 %v82, %v69
    %v84 = vadd.f32 %v81, %v83
    %v85 = vstv %s43
    %v86 = vmul.f32 %v85, %v72
    %v87 = vadd.f32 %v84, %v86
    %v88 = vxor.u32 %v87, 2147483648
    %v89 = vmul.f32 %v88, 1.442695
    %v90 = vpow.pop %v89
    %v91 = vadd.f32 %v90, 1.0
    %v92 = vrcp.pop %v91
    %v93 = vmul.f32 1.0, %v92
    %94 = vst [vmem:[%s3] sm:$0xff] %v93
    %v95 = vstv %s44
    %v96 = vmul.f32 %v95, %v60
    %v97 = vadd.f32 %v57, %v96
    %v98 = vstv %s45
    %v99 = vmul.f32 %v98, %v63
    %v100 = vadd.f32 %v97, %v99
    %v101 = vstv %s46
    %v102 = vmul.f32 %v101, %v66
    %v103 = vadd.f32 %v100, %v102
    %v104 = vstv %s47
    %v105 = vmul.f32 %v104, %v69
    %v106 = vadd.f32 %v103, %v105
    %v107 = vstv %s48
    %v108 = vmul.f32 %v107, %v72
    %v109 = vadd.f32 %v106, %v108
    %v110 = vxor.u32 %v109, 2147483648
    %v111 = vmul.f32 %v110, 1.442695
    %v112 = vpow.pop %v111
    %v113 = vadd.f32 %v112, 1.0
    %v114 = vrcp.pop %v113
    %v115 = vmul.f32 1.0, %v114
    %s116 = scalar_lea.vmem %s3, %s61
    %117 = vst [vmem:[%s116] sm:$0xff] %v115
    %v118 = vstv %s49
    %v119 = vmul.f32 %v118, %v60
    %v120 = vadd.f32 %v59, %v119
    %v121 = vstv %s50
    %v122 = vmul.f32 %v121, %v63
    %v123 = vadd.f32 %v120, %v122
    %v124 = vstv %s51
    %v125 = vmul.f32 %v124, %v66
    %v126 = vadd.f32 %v123, %v125
    %v127 = vstv %s52
    %v128 = vmul.f32 %v127, %v69
    %v129 = vadd.f32 %v126, %v128
    %v130 = vstv %s53
    %v131 = vmul.f32 %v130, %v72
    %v132 = vadd.f32 %v129, %v131
    %v133 = vxor.u32 %v132, 2147483648
    %v134 = vmul.f32 %v133, 1.442695
    %v135 = vpow.pop %v134
    %v136 = vadd.f32 %v135, 1.0
    %v137 = vrcp.pop %v136
    %v138 = vmul.f32 1.0, %v137
    %s139 = scalar_lea.vmem %s3, %s64
    %140 = vst [vmem:[%s139] sm:$0xff] %v138
    // Predicated region
    $region22: #{neuron_forward.1} parent=1 // pred_check
      _
    $region23: #{neuron_forward.1} parent=1 // pred_check_branch
      %142 = sbr.rel (0) target = $region25
    $region24: #{neuron_forward.1} parent=1 // pred_region
      _
    $region25: #{neuron_forward.1} parent=1 // pred_fallthru
      _
    // Predicated region
    $region26: #{neuron_forward.1} parent=1 // pred_check
      _
    $region27: #{neuron_forward.1} parent=1 // pred_check_branch
      %144 = sbr.rel (0) target = $region29
    $region28: #{neuron_forward.1} parent=1 // pred_region
      _
    $region29: #{neuron_forward.1} parent=1 // pred_fallthru
      _
    %145 = vsyncpa [#allocation3], 1
    %146 = vsyncpa [#allocation5], 1

</llo_original>
